<compile_context>
chip_gen: v6e
topology: v6e:2x2x1
jax: 0.10.0
libtpu: 0.0.40
codegen_flags: <defaults>
</compile_context>

<pallas_src>
from functools import partial

import jax
import jax.numpy as jnp
from jax.experimental import pallas as pl
from jax.experimental.pallas import tpu as pltpu


def _round_up(x, m):
    return (x + m - 1) // m * m


def _tensorcores_per_chip():
    """Best-effort detection of v7x (2 TCs/chip).  1 on v5e/v6e or on failure."""
    try:
        kind = jax.devices()[0].device_kind.lower()
    except Exception:
        return 1
    return 2 if ("v7" in kind or "7x" in kind) else 1


def _pick_batch_tile(batch, block_b, min_steps):
    """Return (tile_b, padded_batch).  tile_b is a multiple of 8 and divides
    padded_batch, so the (8,128) rule holds and no extra batch padding pass is
    needed when batch is already a multiple of 8."""
    block_b = max(8, (block_b // 8) * 8)                 # guard bad callers
    b_pad = _round_up(batch, 8)
    if min_steps > 1 and b_pad >= 8 * min_steps:          # v7x: use both TCs
        block_b = min(block_b, max(8, (b_pad // min_steps // 8) * 8))
    if b_pad <= block_b:
        return b_pad, b_pad
    for tb in range(block_b, 7, -8):                      # largest divisor tile
        if b_pad % tb == 0:
            return tb, b_pad
    return block_b, _round_up(b_pad, block_b)             # unreachable (8 | b_pad)


# ----------------------------------------------------------------------------
# Kernel: one batch tile per grid step; all params arrive in one packed,
# VMEM-resident buffer (constant index_map -> DMA'd once).
# Packed buffer row layout (param dtype, lane width = max(h_lanes, out_lanes)):
#   [0            , input_size )  : W1^T  (input_size, hidden), zero-padded lanes
#   [in_pad       , in_pad + 1 )  : b1    (1, hidden), zero-padded lanes
#   [in_pad + 8   , + h_lanes  )  : W2^T  (hidden, output), zero-padded rows+lanes
#   [in_pad+8+h_lanes, + 1     )  : b2    (1, output), zero-padded lanes
# All section offsets are sublane (8) aligned; lane slices are 128 aligned.
# ----------------------------------------------------------------------------
def _qnet_kernel(x_ref, p_ref, out_ref, *, input_size, in_pad, h_lanes, out_lanes):
    b1_off = in_pad
    w2_off = in_pad + 8
    b2_off = in_pad + 8 + h_lanes

    cdt = p_ref.dtype                                   # weights pre-cast at pack time
    w1 = p_ref[0:input_size, 0:h_lanes]                 # (input_size, h_lanes)
    b1 = p_ref[b1_off:b1_off + 1, 0:h_lanes]            # (1, h_lanes)
    w2 = p_ref[w2_off:w2_off + h_lanes, 0:out_lanes]    # (h_lanes, out_lanes)
    b2 = p_ref[b2_off:b2_off + 1, 0:out_lanes]          # (1, out_lanes)

    x = x_ref[...]                                      # (tile_b, input_size)

    # Hidden layer: x @ W1^T + b1, ReLU (f32 accumulation + f32 bias/ReLU).
    # Padded hidden lanes stay exactly 0 (zero weights + zero bias, ReLU(0)=0),
    # and the matching padded rows of W2 are zero, so padding never leaks.
    h = jnp.dot(x.astype(cdt), w1, preferred_element_type=jnp.float32)
    h = jnp.maximum(h + b1.astype(jnp.float32), 0.0)

    # Output layer: h @ W2^T + b2 -- lane-dense (tile_b, out_lanes) store.
    o = jnp.dot(h.astype(cdt), w2, preferred_element_type=jnp.float32)
    out_ref[...] = (o + b2.astype(jnp.float32)).astype(out_ref.dtype)


# ----------------------------------------------------------------------------
# One-time parameter packing (outside the per-call path).
# Takes PyTorch nn.Linear layouts: w1 (H, I), b1 (H,), w2 (O, H), b2 (O,).
# ----------------------------------------------------------------------------
def pack_params(w1, b1, w2, b2, *, dtype=jnp.float32):
    hidden_size, input_size = w1.shape
    output_size = w2.shape[0]

    h_lanes = _round_up(hidden_size, 128)
    out_lanes = _round_up(output_size, 128)
    lanes = max(h_lanes, out_lanes)
    in_pad = _round_up(input_size, 8)
    rows = in_pad + 16 + h_lanes  # W1 | b1 (8-row section) | W2 | b2 (8-row section)

    buf = jnp.zeros((rows, lanes), dtype)
    buf = buf.at[0:input_size, 0:hidden_size].set(w1.T.astype(dtype))
    buf = buf.at[in_pad, 0:hidden_size].set(b1.astype(dtype))
    buf = buf.at[in_pad + 8:in_pad + 8 + hidden_size, 0:output_size].set(
        w2.T.astype(dtype))
    buf = buf.at[in_pad + 8 + h_lanes, 0:output_size].set(b2.astype(dtype))

    dims = dict(input_size=input_size, hidden_size=hidden_size,
                output_size=output_size, in_pad=in_pad,
                h_lanes=h_lanes, out_lanes=out_lanes, lanes=lanes, rows=rows)
    return buf, dims


# ----------------------------------------------------------------------------
# Forward pass.
# ----------------------------------------------------------------------------
def linear_qnet_forward(x, packed_params, dims, *, block_b=512,
                        params_buffer_count=1, slice_output=True):
    """x: (B, input_size) or (input_size,) f32 -> (B, output_size) f32.

    slice_output=False returns the lane-padded (b_pad, out_lanes) slab (lets a
    fused consumer, e.g. the RL action argmax, skip one extra HBM pass).
    """
    squeeze = x.ndim == 1
    if squeeze:
        x = x[None, :]
    B = x.shape[0]
    input_size = dims["input_size"]
    out_lanes = dims["out_lanes"]
    rows, lanes = dims["rows"], dims["lanes"]

    tb, b_pad = _pick_batch_tile(B, block_b, _tensorcores_per_chip())
    x_p = x if b_pad == B else jnp.pad(x, ((0, b_pad - B), (0, 0)))

    # Grid-invariant packed params: single-buffer if supported (no point
    # double-buffering a block whose index never changes).
    if params_buffer_count is not None:
        param_spec = pl.BlockSpec((rows, lanes), lambda i: (0, 0),
                                  pipeline_mode=pl.Buffered(params_buffer_count))
    else:
        param_spec = pl.BlockSpec((rows, lanes), lambda i: (0, 0))

    kernel = partial(_qnet_kernel, input_size=input_size, in_pad=dims["in_pad"],
                     h_lanes=dims["h_lanes"], out_lanes=out_lanes)

    out_padded = pl.pallas_call(
        kernel,
        out_shape=jax.ShapeDtypeStruct((b_pad, out_lanes), jnp.float32),
        grid=(b_pad // tb,),
        in_specs=[
            pl.BlockSpec((tb, input_size), lambda i: (i, 0)),   # batch tile
            param_spec,                                         # resident params
        ],
        out_specs=pl.BlockSpec((tb, out_lanes), lambda i: (i, 0)),  # lane-dense store
        compiler_params=pltpu.CompilerParams(
            dimension_semantics=("parallel",)),                 # v7x: 2 TCs
    )(x_p, packed_params)

    if not slice_output:
        return out_padded
    out = out_padded[:B, :dims["output_size"]]
    return out[0] if squeeze else out


def init_params(key, input_size, hidden_size, output_size):
    """Deterministic init mimicking nn.Linear's uniform(-1/sqrt(fan_in), ...)."""
    k1, k2, k3, k4 = jax.random.split(key, 4)
    bound1 = 1.0 / jnp.sqrt(input_size)
    bound2 = 1.0 / jnp.sqrt(hidden_size)
    w1 = jax.random.uniform(k1, (hidden_size, input_size), jnp.float32, -bound1, bound1)
    b1 = jax.random.uniform(k2, (hidden_size,), jnp.float32, -bound1, bound1)
    w2 = jax.random.uniform(k3, (output_size, hidden_size), jnp.float32, -bound2, bound2)
    b2 = jax.random.uniform(k4, (output_size,), jnp.float32, -bound2, bound2)
    return w1, b1, w2, b2


if __name__ == "__main__":
    # Shapes consistent with a typical Linear_QNet (snake QNet style), kept small.
    batch, input_size, hidden_size, output_size = 8, 16, 32, 4

    key = jax.random.PRNGKey(0)
    kx, kp = jax.random.split(key)
    x = jax.random.normal(kx, (batch, input_size), jnp.float32)
    w1, b1, w2, b2 = init_params(kp, input_size, hidden_size, output_size)

    def ref_fn(xx):
        return jnp.maximum(xx @ w1.T + b1, 0.0) @ w2.T + b2

    # Pack once at init (not per call); bf16 buffer for the MXU-operand path.
    packed_f32, dims = pack_params(w1, b1, w2, b2)
    packed_bf16, _ = pack_params(w1, b1, w2, b2, dtype=jnp.bfloat16)

    # f32 path (exact parity with the PyTorch module).  Fall back to default
    # double-buffered params if this JAX build rejects pipeline_mode on a
    # top-level pallas_call BlockSpec.
    pbufs = 1
    fwd = jax.jit(lambda xx, pp: linear_qnet_forward(xx, pp, dims,
                                                     params_buffer_count=pbufs))
    try:
        out = jax.block_until_ready(fwd(x, packed_f32))
    except Exception:
        pbufs = None
        fwd = jax.jit(lambda xx, pp: linear_qnet_forward(xx, pp, dims,
                                                         params_buffer_count=pbufs))
        out = jax.block_until_ready(fwd(x, packed_f32))

    ref = ref_fn(x)
    assert out.shape == (batch, output_size)
    assert jnp.allclose(out, ref, atol=1e-5, rtol=1e-5), "f32 path mismatch"

    # batch=1 act() path (exercises the 8-sublane batch pad + slice).
    x1 = x[:1]
    out1 = jax.block_until_ready(fwd(x1, packed_f32))
    assert out1.shape == (1, output_size)
    assert jnp.allclose(out1, ref_fn(x1), atol=1e-5, rtol=1e-5), "batch=1 mismatch"

    # Multi-step grid: params stay VMEM-resident across batch tiles.
    x48 = jax.random.normal(jax.random.PRNGKey(1), (48, input_size), jnp.float32)
    fwd_tiled = jax.jit(lambda xx, pp: linear_qnet_forward(
        xx, pp, dims, block_b=16, params_buffer_count=pbufs))
    out48 = jax.block_until_ready(fwd_tiled(x48, packed_f32))
    assert jnp.allclose(out48, ref_fn(x48), atol=1e-5, rtol=1e-5), "tiled grid mismatch"

    # bf16-operand MXU path (weights pre-cast at pack time, f32 accumulation).
    out_bf16 = jax.block_until_ready(fwd(x, packed_bf16))
    assert out_bf16.shape == (batch, output_size)
    assert jnp.allclose(out_bf16, ref, atol=5e-2, rtol=5e-2), "bf16 path mismatch"

    print("KERNEL_OK")
</pallas_src>

<mosaic_0001>
module attributes {stable_mosaic.version = 11 : i64} {
  func.func @_qnet_kernel(%arg0: i32, %arg1: memref<8x16xf32, #tpu.memory_space<vmem>>, %arg2: memref<160x128xf32, #tpu.memory_space<vmem>>, %arg3: memref<8x128xf32, #tpu.memory_space<vmem>>) attributes {dimension_semantics = [#tpu.dimension_semantics<parallel>], iteration_bounds = array<i64: 1>, scalar_prefetch = 0 : i64, scratch_operands = 0 : i64, tpu.core_type = #tpu.core_type<tc>, window_params = [{transform_indices = @transform_0, window_bounds = array<i64: 8, 16>}, {pipeline_mode = #tpu.pipeline_mode<synchronous>, transform_indices = @transform_1, window_bounds = array<i64: 160, 128>}, {transform_indices = @transform_2, window_bounds = array<i64: 8, 128>}]} {
    %c0 = arith.constant 0 : index
    %c0_0 = arith.constant 0 : index
    %0 = vector.load %arg2[%c0, %c0_0] : memref<160x128xf32, #tpu.memory_space<vmem>>, vector<16x128xf32>
    %c16 = arith.constant 16 : index
    %c0_1 = arith.constant 0 : index
    %1 = vector.load %arg2[%c16, %c0_1] : memref<160x128xf32, #tpu.memory_space<vmem>>, vector<1x128xf32>
    %c24 = arith.constant 24 : index
    %c0_2 = arith.constant 0 : index
    %2 = vector.load %arg2[%c24, %c0_2] : memref<160x128xf32, #tpu.memory_space<vmem>>, vector<128x128xf32>
    %c152 = arith.constant 152 : index
    %c0_3 = arith.constant 0 : index
    %3 = vector.load %arg2[%c152, %c0_3] : memref<160x128xf32, #tpu.memory_space<vmem>>, vector<1x128xf32>
    %c0_4 = arith.constant 0 : index
    %c0_5 = arith.constant 0 : index
    %4 = vector.load %arg1[%c0_4, %c0_5] : memref<8x16xf32, #tpu.memory_space<vmem>>, vector<8x16xf32>
    %cst = arith.constant dense<0.000000e+00> : vector<8x128xf32>
    %5 = tpu.matmul %4, %0, %cst {dimension_numbers = #tpu.dot_dimension_numbers<[1], [0], [0], [1], [0, 0, 1, 1], [], []>} : vector<8x16xf32>, vector<16x128xf32>, vector<8x128xf32> -> vector<8x128xf32>
    %6 = vector.broadcast %1 : vector<1x128xf32> to vector<8x128xf32>
    %7 = arith.addf %5, %6 : vector<8x128xf32>
    %cst_6 = arith.constant 0.000000e+00 : f32
    %8 = vector.broadcast %cst_6 : f32 to vector<8x128xf32>
    %9 = arith.maximumf %7, %8 : vector<8x128xf32>
    %cst_7 = arith.constant dense<0.000000e+00> : vector<8x128xf32>
    %10 = tpu.matmul %9, %2, %cst_7 {dimension_numbers = #tpu.dot_dimension_numbers<[1], [0], [0], [1], [0, 0, 1, 1], [], []>} : vector<8x128xf32>, vector<128x128xf32>, vector<8x128xf32> -> vector<8x128xf32>
    %11 = vector.broadcast %3 : vector<1x128xf32> to vector<8x128xf32>
    %12 = arith.addf %10, %11 : vector<8x128xf32>
    %c0_8 = arith.constant 0 : index
    %c0_9 = arith.constant 0 : index
    %13 = vector.load %arg3[%c0_8, %c0_9] : memref<8x128xf32, #tpu.memory_space<vmem>>, vector<8x128xf32>
    tpu.vector_store %arg3[%c0_8, %c0_9], %12 {strides = array<i32>} : memref<8x128xf32, #tpu.memory_space<vmem>>, vector<8x128xf32>,
    return
  }
  func.func @transform_0(%arg0: i32) -> (i32, i32) {
    %c0_i32 = arith.constant 0 : i32
    %c0_i32_0 = arith.constant 0 : i32
    return %arg0, %c0_i32 : i32, i32
  }
  func.func @transform_1(%arg0: i32) -> (i32, i32) {
    %c0_i32 = arith.constant 0 : i32
    %c0_i32_0 = arith.constant 0 : i32
    %c0_i32_1 = arith.constant 0 : i32
    return %c0_i32, %c0_i32_0 : i32, i32
  }
  func.func @transform_2(%arg0: i32) -> (i32, i32) {
    %c0_i32 = arith.constant 0 : i32
    %c0_i32_0 = arith.constant 0 : i32
    return %arg0, %c0_i32 : i32, i32
  }
}

module attributes {stable_mosaic.version = 11 : i64} {
  func.func @_qnet_kernel(%arg0: i32, %arg1: memref<8x16xf32, #tpu.memory_space<vmem>>, %arg2: memref<160x128xf32, #tpu.memory_space<vmem>>, %arg3: memref<8x128xf32, #tpu.memory_space<vmem>>) attributes {dimension_semantics = [#tpu.dimension_semantics<parallel>], iteration_bounds = array<i64: 1>, scalar_prefetch = 0 : i64, scratch_operands = 0 : i64, tpu.core_type = #tpu.core_type<tc>, window_params = [{transform_indices = @transform_0, window_bounds = array<i64: 8, 16>}, {pipeline_mode = #tpu.pipeline_mode<synchronous>, transform_indices = @transform_1, window_bounds = array<i64: 160, 128>}, {transform_indices = @transform_2, window_bounds = array<i64: 8, 128>}]} {
    %c0 = arith.constant 0 : index
    %c0_0 = arith.constant 0 : index
    %0 = vector.load %arg2[%c0, %c0_0] : memref<160x128xf32, #tpu.memory_space<vmem>>, vector<16x128xf32>
    %c16 = arith.constant 16 : index
    %c0_1 = arith.constant 0 : index
    %1 = vector.load %arg2[%c16, %c0_1] : memref<160x128xf32, #tpu.memory_space<vmem>>, vector<1x128xf32>
    %c24 = arith.constant 24 : index
    %c0_2 = arith.constant 0 : index
    %2 = vector.load %arg2[%c24, %c0_2] : memref<160x128xf32, #tpu.memory_space<vmem>>, vector<128x128xf32>
    %c152 = arith.constant 152 : index
    %c0_3 = arith.constant 0 : index
    %3 = vector.load %arg2[%c152, %c0_3] : memref<160x128xf32, #tpu.memory_space<vmem>>, vector<1x128xf32>
    %c0_4 = arith.constant 0 : index
    %c0_5 = arith.constant 0 : index
    %4 = vector.load %arg1[%c0_4, %c0_5] : memref<8x16xf32, #tpu.memory_space<vmem>>, vector<8x16xf32>
    %cst = arith.constant dense<0.000000e+00> : vector<8x128xf32>
    %5 = tpu.matmul %4, %0, %cst {dimension_numbers = #tpu.dot_dimension_numbers<[1], [0], [0], [1], [0, 0, 1, 1], [], []>} : vector<8x16xf32>, vector<16x128xf32>, vector<8x128xf32> -> vector<8x128xf32>
    %6 = vector.broadcast %1 : vector<1x128xf32> to vector<8x128xf32>
    %7 = arith.addf %5, %6 : vector<8x128xf32>
    %cst_6 = arith.constant 0.000000e+00 : f32
    %8 = vector.broadcast %cst_6 : f32 to vector<8x128xf32>
    %9 = arith.maximumf %7, %8 : vector<8x128xf32>
    %cst_7 = arith.constant dense<0.000000e+00> : vector<8x128xf32>
    %10 = tpu.matmul %9, %2, %cst_7 {dimension_numbers = #tpu.dot_dimension_numbers<[1], [0], [0], [1], [0, 0, 1, 1], [], []>} : vector<8x128xf32>, vector<128x128xf32>, vector<8x128xf32> -> vector<8x128xf32>
    %11 = vector.broadcast %3 : vector<1x128xf32> to vector<8x128xf32>
    %12 = arith.addf %10, %11 : vector<8x128xf32>
    %c0_8 = arith.constant 0 : index
    %c0_9 = arith.constant 0 : index
    %13 = vector.load %arg3[%c0_8, %c0_9] : memref<8x128xf32, #tpu.memory_space<vmem>>, vector<8x128xf32>
    tpu.vector_store %arg3[%c0_8, %c0_9], %12 {strides = array<i32>} : memref<8x128xf32, #tpu.memory_space<vmem>>, vector<8x128xf32>,
    return
  }
  func.func @transform_0(%arg0: i32) -> (i32, i32) {
    %c0_i32 = arith.constant 0 : i32
    %c0_i32_0 = arith.constant 0 : i32
    return %arg0, %c0_i32 : i32, i32
  }
  func.func @transform_1(%arg0: i32) -> (i32, i32) {
    %c0_i32 = arith.constant 0 : i32
    %c0_i32_0 = arith.constant 0 : i32
    %c0_i32_1 = arith.constant 0 : i32
    return %c0_i32, %c0_i32_0 : i32, i32
  }
  func.func @transform_2(%arg0: i32) -> (i32, i32) {
    %c0_i32 = arith.constant 0 : i32
    %c0_i32_0 = arith.constant 0 : i32
    return %arg0, %c0_i32 : i32, i32
  }
}

</mosaic_0001>

<llo_original>
// kernel: _lambda_.1
$region0: #{_lambda_.1}
  #allocation0 [shape = 'u32[]', space=smem, size = 0x4, offset = 0x4, fixed_abs, tag = 'smem constant byte address 0x4 - core index']
  #allocation1 [shape = 'u32[144,128]{1,0:T(1,128)}', space=vmem, size = 0x12000, scoped, tag = 'internal scratch']
  %s0 = inlined_call_operand.hbm [shape: f32[8,16], index: 0, kind: input, shape index: {}]
  %s1 = inlined_call_operand.hbm [shape: f32[160,128], index: 1, kind: input, shape index: {}]
  %s2 = inlined_call_operand.vmem [shape: f32[8,128], index: 2, kind: output, shape index: {}]
  %s3 = sld [smem:[#allocation0]]
  $region26: #{_lambda_.1} parent=0
    _
  %s5 = ssub.s32 1, %s3
  %s6 = scalar_select 0, %s5, %s3
  $region1: #{_lambda_.1} parent=0
    #allocation2 [shape = 'u8[4096]{0}', space=vmem, size = 0x1000, scoped, tag = 'input window, operand 0, single buffered']
    #allocation3 [shape = 's32[1]{0}', space=sflag, size = 0x4, scoped, tag = 'scoped memory for _lambda_.1']
    #allocation4 [shape = 'u8[81920]{0}', space=vmem, size = 0x14000, scoped, tag = 'input window, operand 1, single buffered']
    #allocation5 [shape = 's32[1]{0}', space=sflag, size = 0x4, scoped, tag = 'scoped memory for _lambda_.1']
    %7 = vsyncpa [#allocation3], 0
    %8 = vsyncpa [#allocation5], 0
    // Predicated region
    $region2: #{_lambda_.1} parent=1 // pred_check
      _
    $region3: #{_lambda_.1} parent=1 // pred_check_branch
      %10 = sbr.rel (0) target = $region5
    $region4: #{_lambda_.1} parent=1 // pred_region
      %s12 = ssub.s32 128, 128
      %13 = vsyncadd [#allocation3], %s12
      %s15 = sshll.u32 [#allocation2], 4
      %s16 = int_to_ptr.vmem [resolvable:$true] %s15
      %18 = dma.hbm_to_vmem [thread:$0]  %s0, 128, %s16, [#allocation3]
    $region5: #{_lambda_.1} parent=1 // pred_fallthru
      _
    // Predicated region
    $region6: #{_lambda_.1} parent=1 // pred_check
      _
    $region7: #{_lambda_.1} parent=1 // pred_check_branch
      %20 = sbr.rel (0) target = $region9
    $region8: #{_lambda_.1} parent=1 // pred_region
      %s22 = ssub.s32 2560, 2560
      %23 = vsyncadd [#allocation5], %s22
      %s24 = sshll.u32 [#allocation4], 4
      %s25 = int_to_ptr.vmem [resolvable:$true] %s24
      %30 = dma.hbm_to_vmem [thread:$0]  %s1, 2560, %s25, [#allocation5], 128, 128, 8
    $region9: #{_lambda_.1} parent=1 // pred_fallthru
      _
    // Predicated region
    $region10: #{_lambda_.1} parent=1 // pred_check
      _
    $region11: #{_lambda_.1} parent=1 // pred_check_branch
      %32 = sbr.rel (0) target = $region13
    $region12: #{_lambda_.1} parent=1 // pred_region
      %33 = dma.done [#allocation3], 128
    $region13: #{_lambda_.1} parent=1 // pred_fallthru
      _
    // Predicated region
    $region14: #{_lambda_.1} parent=1 // pred_check
      _
    $region15: #{_lambda_.1} parent=1 // pred_check_branch
      %35 = sbr.rel (0) target = $region17
    $region16: #{_lambda_.1} parent=1 // pred_region
      %36 = dma.done [#allocation5], 2560
    $region17: #{_lambda_.1} parent=1 // pred_fallthru
      _
    %v37 = vld [vmem:[#allocation4] sm:$0xff]
    %v38 = vld [vmem:[#allocation4 + $0x8] sm:$0xff]
    %v39 = vld [vmem:[#allocation4 + $0x10] sm:$0x1]
    %v40 = vld [vmem:[#allocation4 + $0x18] sm:$0xff]
    %v41 = vld [vmem:[#allocation4 + $0x20] sm:$0xff]
    %v42 = vld [vmem:[#allocation4 + $0x28] sm:$0xff]
    %v43 = vld [vmem:[#allocation4 + $0x30] sm:$0xff]
    %v44 = vld [vmem:[#allocation4 + $0x38] sm:$0xff]
    %v45 = vld [vmem:[#allocation4 + $0x40] sm:$0xff]
    %v46 = vld [vmem:[#allocation4 + $0x48] sm:$0xff]
    %v47 = vld [vmem:[#allocation4 + $0x50] sm:$0xff]
    %v48 = vld [vmem:[#allocation4 + $0x58] sm:$0xff]
    %v49 = vld [vmem:[#allocation4 + $0x60] sm:$0xff]
    %v50 = vld [vmem:[#allocation4 + $0x68] sm:$0xff]
    %v51 = vld [vmem:[#allocation4 + $0x70] sm:$0xff]
    %v52 = vld [vmem:[#allocation4 + $0x78] sm:$0xff]
    %v53 = vld [vmem:[#allocation4 + $0x80] sm:$0xff]
    %v54 = vld [vmem:[#allocation4 + $0x88] sm:$0xff]
    %v55 = vld [vmem:[#allocation4 + $0x90] sm:$0xff]
    %v56 = vld [vmem:[#allocation4 + $0x98] sm:$0x1]
    %v57 = vld [vmem:[#allocation2] sm:$0xff]
    %v58 = vlaneseq
    %v59 = vshrl.u32 %v58, 7
    %v60 = vsub.s32 0, %v59
    %v61 = vrot.slane %v39, %v60
    %vm62 = vcmask 130048
    %v64 = vsel %vm62, %v57, 0
    %66 = vmatprep.subr.mxu0 0.0
    %67 = vmatpush1.msra.mxu0 0.0
    %68 = vmatprep.subr.mxu0 0.0
    %69 = vmatpush1.msra.mxu0 0.0
    %70 = vmatprep.subr.mxu0 0.0
    %71 = vmatpush1.msra.mxu0 0.0
    %72 = vmatprep.subr.mxu0 0.0
    %73 = vmatpush1.msra.mxu0 0.0
    %74 = vmatprep.subr.mxu0 0.0
    %75 = vmatpush1.msra.mxu0 0.0
    %76 = vmatprep.subr.mxu0 0.0
    %77 = vmatpush1.msra.mxu0 0.0
    %78 = vmatprep.subr.mxu0 0.0
    %79 = vmatpush1.msra.mxu0 0.0
    %80 = vmatprep.subr.mxu0 0.0
    %81 = vmatpush1.msra.mxu0 0.0
    %82 = vmatprep.subr.mxu0 0.0
    %83 = vmatpush1.msra.mxu0 0.0
    %84 = vmatprep.subr.mxu0 0.0
    %85 = vmatpush1.msra.mxu0 0.0
    %86 = vmatprep.subr.mxu0 0.0
    %87 = vmatpush1.msra.mxu0 0.0
    %88 = vmatprep.subr.mxu0 0.0
    %89 = vmatpush1.msra.mxu0 0.0
    %90 = vmatprep.subr.mxu0 0.0
    %91 = vmatpush1.msra.mxu0 0.0
    %92 = vmatprep.subr.mxu0 0.0
    %93 = vmatpush1.msra.mxu0 0.0
    %94 = vmatprep.subr.mxu0 0.0
    %95 = vmatpush1.msra.mxu0 %v38
    %96 = vmatprep.subr.mxu0 0.0
    %97 = vmatpush1.msra.mxu0 %v37
    %98 = vmatprep.subr.mxu0 0.0
    %99 = vmatpush2.msra.mxu0 0.0
    %100 = vmatprep.subr.mxu0 0.0
    %101 = vmatpush2.msra.mxu0 0.0
    %102 = vmatprep.subr.mxu0 0.0
    %103 = vmatpush2.msra.mxu0 0.0
    %104 = vmatprep.subr.mxu0 0.0
    %105 = vmatpush2.msra.mxu0 0.0
    %106 = vmatprep.subr.mxu0 0.0
    %107 = vmatpush2.msra.mxu0 0.0
    %108 = vmatprep.subr.mxu0 0.0
    %109 = vmatpush2.msra.mxu0 0.0
    %110 = vmatprep.subr.mxu0 0.0
    %111 = vmatpush2.msra.mxu0 0.0
    %112 = vmatprep.subr.mxu0 0.0
    %113 = vmatpush2.msra.mxu0 0.0
    %114 = vmatprep.subr.mxu0 0.0
    %115 = vmatpush2.msra.mxu0 0.0
    %116 = vmatprep.subr.mxu0 0.0
    %117 = vmatpush2.msra.mxu0 0.0
    %118 = vmatprep.subr.mxu0 0.0
    %119 = vmatpush2.msra.mxu0 0.0
    %120 = vmatprep.subr.mxu0 0.0
    %121 = vmatpush2.msra.mxu0 0.0
    %122 = vmatprep.subr.mxu0 0.0
    %123 = vmatpush2.msra.mxu0 0.0
    %124 = vmatprep.subr.mxu0 0.0
    %125 = vmatpush2.msra.mxu0 0.0
    %126 = vmatprep.subr.mxu0 0.0
    %127 = vmatpush2.msra.mxu0 0.0
    %128 = vmatprep.subr.mxu0 0.0
    %129 = vmatpush2.msra.mxu0 0.0
    %130 = vmatprep.mubr.f32.mxu0 0.0
    %131 = vmatmul.mubr.f32.gmra.mxu0 %v64
    %v132 = vpop.f32.mrf.mxu0
    %v133 = vadd.f32 %v61, %v132
    %v134 = vpop.f32.mrf.mxu0
    %135 = vdwg.mxu0
    %v136 = vmax.f32 %v133, 0.0
    %v137 = vlaneseq
    %v138 = vshrl.u32 %v137, 7
    %v139 = vsub.s32 0, %v138
    %v140 = vrot.slane %v56, %v139
    %141 = vmatprep.subr.mxu0 0.0
    %142 = vmatpush1.msra.mxu0 %v55
    %143 = vmatprep.subr.mxu0 0.0
    %144 = vmatpush1.msra.mxu0 %v54
    %145 = vmatprep.subr.mxu0 0.0
    %146 = vmatpush1.msra.mxu0 %v53
    %147 = vmatprep.subr.mxu0 0.0
    %148 = vmatpush1.msra.mxu0 %v52
    %149 = vmatprep.subr.mxu0 0.0
    %150 = vmatpush1.msra.mxu0 %v51
    %151 = vmatprep.subr.mxu0 0.0
    %152 = vmatpush1.msra.mxu0 %v50
    %153 = vmatprep.subr.mxu0 0.0
    %154 = vmatpush1.msra.mxu0 %v49
    %155 = vmatprep.subr.mxu0 0.0
    %156 = vmatpush1.msra.mxu0 %v48
    %157 = vmatprep.subr.mxu0 0.0
    %158 = vmatpush1.msra.mxu0 %v47
    %159 = vmatprep.subr.mxu0 0.0
    %160 = vmatpush1.msra.mxu0 %v46
    %161 = vmatprep.subr.mxu0 0.0
    %162 = vmatpush1.msra.mxu0 %v45
    %163 = vmatprep.subr.mxu0 0.0
    %164 = vmatpush1.msra.mxu0 %v44
    %165 = vmatprep.subr.mxu0 0.0
    %166 = vmatpush1.msra.mxu0 %v43
    %167 = vmatprep.subr.mxu0 0.0
    %168 = vmatpush1.msra.mxu0 %v42
    %169 = vmatprep.subr.mxu0 0.0
    %170 = vmatpush1.msra.mxu0 %v41
    %171 = vmatprep.subr.mxu0 0.0
    %172 = vmatpush1.msra.mxu0 %v40
    %173 = vmatprep.subr.mxu0 0.0
    %174 = vmatpush2.msra.mxu0 0.0
    %175 = vmatprep.subr.mxu0 0.0
    %176 = vmatpush2.msra.mxu0 0.0
    %177 = vmatprep.subr.mxu0 0.0
    %178 = vmatpush2.msra.mxu0 0.0
    %179 = vmatprep.subr.mxu0 0.0
    %180 = vmatpush2.msra.mxu0 0.0
    %181 = vmatprep.subr.mxu0 0.0
    %182 = vmatpush2.msra.mxu0 0.0
    %183 = vmatprep.subr.mxu0 0.0
    %184 = vmatpush2.msra.mxu0 0.0
    %185 = vmatprep.subr.mxu0 0.0
    %186 = vmatpush2.msra.mxu0 0.0
    %187 = vmatprep.subr.mxu0 0.0
    %188 = vmatpush2.msra.mxu0 0.0
    %189 = vmatprep.subr.mxu0 0.0
    %190 = vmatpush2.msra.mxu0 0.0
    %191 = vmatprep.subr.mxu0 0.0
    %192 = vmatpush2.msra.mxu0 0.0
    %193 = vmatprep.subr.mxu0 0.0
    %194 = vmatpush2.msra.mxu0 0.0
    %195 = vmatprep.subr.mxu0 0.0
    %196 = vmatpush2.msra.mxu0 0.0
    %197 = vmatprep.subr.mxu0 0.0
    %198 = vmatpush2.msra.mxu0 0.0
    %199 = vmatprep.subr.mxu0 0.0
    %200 = vmatpush2.msra.mxu0 0.0
    %201 = vmatprep.subr.mxu0 0.0
    %202 = vmatpush2.msra.mxu0 0.0
    %203 = vmatprep.subr.mxu0 0.0
    %204 = vmatpush2.msra.mxu0 0.0
    %205 = vmatprep.mubr.f32.mxu0 0.0
    %206 = vmatmul.mubr.f32.gmra.mxu0 %v136
    %v207 = vpop.f32.mrf.mxu0
    %v208 = vadd.f32 %v140, %v207
    %v209 = vpop.f32.mrf.mxu0
    %210 = vdwg.mxu0
    %211 = vst [vmem:[%s2] sm:$0xff] %v208
    // Predicated region
    $region18: #{_lambda_.1} parent=1 // pred_check
      _
    $region19: #{_lambda_.1} parent=1 // pred_check_branch
      %213 = sbr.rel (0) target = $region21
    $region20: #{_lambda_.1} parent=1 // pred_region
      _
    $region21: #{_lambda_.1} parent=1 // pred_fallthru
      _
    // Predicated region
    $region22: #{_lambda_.1} parent=1 // pred_check
      _
    $region23: #{_lambda_.1} parent=1 // pred_check_branch
      %215 = sbr.rel (0) target = $region25
    $region24: #{_lambda_.1} parent=1 // pred_region
      _
    $region25: #{_lambda_.1} parent=1 // pred_fallthru
      _
    %216 = vsyncpa [#allocation3], 1
    %217 = vsyncpa [#allocation5], 1

// kernel: _lambda_.1
$region0: #{_lambda_.1}
  #allocation0 [shape = 'u32[]', space=smem, size = 0x4, offset = 0x4, fixed_abs, tag = 'smem constant byte address 0x4 - core index']
  #allocation1 [shape = 'u32[144,128]{1,0:T(1,128)}', space=vmem, size = 0x12000, scoped, tag = 'internal scratch']
  %s0 = inlined_call_operand.hbm [shape: f32[8,16], index: 0, kind: input, shape index: {}]
  %s1 = inlined_call_operand.hbm [shape: f32[160,128], index: 1, kind: input, shape index: {}]
  %s2 = inlined_call_operand.vmem [shape: f32[8,128], index: 2, kind: output, shape index: {}]
  %s3 = sld [smem:[#allocation0]]
  $region26: #{_lambda_.1} parent=0
    _
  %s5 = ssub.s32 1, %s3
  %s6 = scalar_select 0, %s5, %s3
  $region1: #{_lambda_.1} parent=0
    #allocation2 [shape = 'u8[4096]{0}', space=vmem, size = 0x1000, scoped, tag = 'input window, operand 0, single buffered']
    #allocation3 [shape = 's32[1]{0}', space=sflag, size = 0x4, scoped, tag = 'scoped memory for _lambda_.1']
    #allocation4 [shape = 'u8[81920]{0}', space=vmem, size = 0x14000, scoped, tag = 'input window, operand 1, single buffered']
    #allocation5 [shape = 's32[1]{0}', space=sflag, size = 0x4, scoped, tag = 'scoped memory for _lambda_.1']
    %7 = vsyncpa [#allocation3], 0
    %8 = vsyncpa [#allocation5], 0
    // Predicated region
    $region2: #{_lambda_.1} parent=1 // pred_check
      _
    $region3: #{_lambda_.1} parent=1 // pred_check_branch
      %10 = sbr.rel (0) target = $region5
    $region4: #{_lambda_.1} parent=1 // pred_region
      %s12 = ssub.s32 128, 128
      %13 = vsyncadd [#allocation3], %s12
      %s15 = sshll.u32 [#allocation2], 4
      %s16 = int_to_ptr.vmem [resolvable:$true] %s15
      %18 = dma.hbm_to_vmem [thread:$0]  %s0, 128, %s16, [#allocation3]
    $region5: #{_lambda_.1} parent=1 // pred_fallthru
      _
    // Predicated region
    $region6: #{_lambda_.1} parent=1 // pred_check
      _
    $region7: #{_lambda_.1} parent=1 // pred_check_branch
      %20 = sbr.rel (0) target = $region9
    $region8: #{_lambda_.1} parent=1 // pred_region
      %s22 = ssub.s32 2560, 2560
      %23 = vsyncadd [#allocation5], %s22
      %s24 = sshll.u32 [#allocation4], 4
      %s25 = int_to_ptr.vmem [resolvable:$true] %s24
      %30 = dma.hbm_to_vmem [thread:$0]  %s1, 2560, %s25, [#allocation5], 128, 128, 8
    $region9: #{_lambda_.1} parent=1 // pred_fallthru
      _
    // Predicated region
    $region10: #{_lambda_.1} parent=1 // pred_check
      _
    $region11: #{_lambda_.1} parent=1 // pred_check_branch
      %32 = sbr.rel (0) target = $region13
    $region12: #{_lambda_.1} parent=1 // pred_region
      %33 = dma.done [#allocation3], 128
    $region13: #{_lambda_.1} parent=1 // pred_fallthru
      _
    // Predicated region
    $region14: #{_lambda_.1} parent=1 // pred_check
      _
    $region15: #{_lambda_.1} parent=1 // pred_check_branch
      %35 = sbr.rel (0) target = $region17
    $region16: #{_lambda_.1} parent=1 // pred_region
      %36 = dma.done [#allocation5], 2560
    $region17: #{_lambda_.1} parent=1 // pred_fallthru
      _
    %v37 = vld [vmem:[#allocation4] sm:$0xff]
    %v38 = vld [vmem:[#allocation4 + $0x8] sm:$0xff]
    %v39 = vld [vmem:[#allocation4 + $0x10] sm:$0x1]
    %v40 = vld [vmem:[#allocation4 + $0x18] sm:$0xff]
    %v41 = vld [vmem:[#allocation4 + $0x20] sm:$0xff]
    %v42 = vld [vmem:[#allocation4 + $0x28] sm:$0xff]
    %v43 = vld [vmem:[#allocation4 + $0x30] sm:$0xff]
    %v44 = vld [vmem:[#allocation4 + $0x38] sm:$0xff]
    %v45 = vld [vmem:[#allocation4 + $0x40] sm:$0xff]
    %v46 = vld [vmem:[#allocation4 + $0x48] sm:$0xff]
    %v47 = vld [vmem:[#allocation4 + $0x50] sm:$0xff]
    %v48 = vld [vmem:[#allocation4 + $0x58] sm:$0xff]
    %v49 = vld [vmem:[#allocation4 + $0x60] sm:$0xff]
    %v50 = vld [vmem:[#allocation4 + $0x68] sm:$0xff]
    %v51 = vld [vmem:[#allocation4 + $0x70] sm:$0xff]
    %v52 = vld [vmem:[#allocation4 + $0x78] sm:$0xff]
    %v53 = vld [vmem:[#allocation4 + $0x80] sm:$0xff]
    %v54 = vld [vmem:[#allocation4 + $0x88] sm:$0xff]
    %v55 = vld [vmem:[#allocation4 + $0x90] sm:$0xff]
    %v56 = vld [vmem:[#allocation4 + $0x98] sm:$0x1]
    %v57 = vld [vmem:[#allocation2] sm:$0xff]
    %v58 = vlaneseq
    %v59 = vshrl.u32 %v58, 7
    %v60 = vsub.s32 0, %v59
    %v61 = vrot.slane %v39, %v60
    %vm62 = vcmask 130048
    %v64 = vsel %vm62, %v57, 0
    %66 = vmatprep.subr.mxu0 0.0
    %67 = vmatpush1.msra.mxu0 0.0
    %68 = vmatprep.subr.mxu0 0.0
    %69 = vmatpush1.msra.mxu0 0.0
    %70 = vmatprep.subr.mxu0 0.0
    %71 = vmatpush1.msra.mxu0 0.0
    %72 = vmatprep.subr.mxu0 0.0
    %73 = vmatpush1.msra.mxu0 0.0
    %74 = vmatprep.subr.mxu0 0.0
    %75 = vmatpush1.msra.mxu0 0.0
    %76 = vmatprep.subr.mxu0 0.0
    %77 = vmatpush1.msra.mxu0 0.0
    %78 = vmatprep.subr.mxu0 0.0
    %79 = vmatpush1.msra.mxu0 0.0
    %80 = vmatprep.subr.mxu0 0.0
    %81 = vmatpush1.msra.mxu0 0.0
    %82 = vmatprep.subr.mxu0 0.0
    %83 = vmatpush1.msra.mxu0 0.0
    %84 = vmatprep.subr.mxu0 0.0
    %85 = vmatpush1.msra.mxu0 0.0
    %86 = vmatprep.subr.mxu0 0.0
    %87 = vmatpush1.msra.mxu0 0.0
    %88 = vmatprep.subr.mxu0 0.0
    %89 = vmatpush1.msra.mxu0 0.0
    %90 = vmatprep.subr.mxu0 0.0
    %91 = vmatpush1.msra.mxu0 0.0
    %92 = vmatprep.subr.mxu0 0.0
    %93 = vmatpush1.msra.mxu0 0.0
    %94 = vmatprep.subr.mxu0 0.0
    %95 = vmatpush1.msra.mxu0 %v38
    %96 = vmatprep.subr.mxu0 0.0
    %97 = vmatpush1.msra.mxu0 %v37
    %98 = vmatprep.subr.mxu0 0.0
    %99 = vmatpush2.msra.mxu0 0.0
    %100 = vmatprep.subr.mxu0 0.0
    %101 = vmatpush2.msra.mxu0 0.0
    %102 = vmatprep.subr.mxu0 0.0
    %103 = vmatpush2.msra.mxu0 0.0
    %104 = vmatprep.subr.mxu0 0.0
    %105 = vmatpush2.msra.mxu0 0.0
    %106 = vmatprep.subr.mxu0 0.0
    %107 = vmatpush2.msra.mxu0 0.0
    %108 = vmatprep.subr.mxu0 0.0
    %109 = vmatpush2.msra.mxu0 0.0
    %110 = vmatprep.subr.mxu0 0.0
    %111 = vmatpush2.msra.mxu0 0.0
    %112 = vmatprep.subr.mxu0 0.0
    %113 = vmatpush2.msra.mxu0 0.0
    %114 = vmatprep.subr.mxu0 0.0
    %115 = vmatpush2.msra.mxu0 0.0
    %116 = vmatprep.subr.mxu0 0.0
    %117 = vmatpush2.msra.mxu0 0.0
    %118 = vmatprep.subr.mxu0 0.0
    %119 = vmatpush2.msra.mxu0 0.0
    %120 = vmatprep.subr.mxu0 0.0
    %121 = vmatpush2.msra.mxu0 0.0
    %122 = vmatprep.subr.mxu0 0.0
    %123 = vmatpush2.msra.mxu0 0.0
    %124 = vmatprep.subr.mxu0 0.0
    %125 = vmatpush2.msra.mxu0 0.0
    %126 = vmatprep.subr.mxu0 0.0
    %127 = vmatpush2.msra.mxu0 0.0
    %128 = vmatprep.subr.mxu0 0.0
    %129 = vmatpush2.msra.mxu0 0.0
    %130 = vmatprep.mubr.f32.mxu0 0.0
    %131 = vmatmul.mubr.f32.gmra.mxu0 %v64
    %v132 = vpop.f32.mrf.mxu0
    %v133 = vadd.f32 %v61, %v132
    %v134 = vpop.f32.mrf.mxu0
    %135 = vdwg.mxu0
    %v136 = vmax.f32 %v133, 0.0
    %v137 = vlaneseq
    %v138 = vshrl.u32 %v137, 7
    %v139 = vsub.s32 0, %v138
    %v140 = vrot.slane %v56, %v139
    %141 = vmatprep.subr.mxu0 0.0
    %142 = vmatpush1.msra.mxu0 %v55
    %143 = vmatprep.subr.mxu0 0.0
    %144 = vmatpush1.msra.mxu0 %v54
    %145 = vmatprep.subr.mxu0 0.0
    %146 = vmatpush1.msra.mxu0 %v53
    %147 = vmatprep.subr.mxu0 0.0
    %148 = vmatpush1.msra.mxu0 %v52
    %149 = vmatprep.subr.mxu0 0.0
    %150 = vmatpush1.msra.mxu0 %v51
    %151 = vmatprep.subr.mxu0 0.0
    %152 = vmatpush1.msra.mxu0 %v50
    %153 = vmatprep.subr.mxu0 0.0
    %154 = vmatpush1.msra.mxu0 %v49
    %155 = vmatprep.subr.mxu0 0.0
    %156 = vmatpush1.msra.mxu0 %v48
    %157 = vmatprep.subr.mxu0 0.0
    %158 = vmatpush1.msra.mxu0 %v47
    %159 = vmatprep.subr.mxu0 0.0
    %160 = vmatpush1.msra.mxu0 %v46
    %161 = vmatprep.subr.mxu0 0.0
    %162 = vmatpush1.msra.mxu0 %v45
    %163 = vmatprep.subr.mxu0 0.0
    %164 = vmatpush1.msra.mxu0 %v44
    %165 = vmatprep.subr.mxu0 0.0
    %166 = vmatpush1.msra.mxu0 %v43
    %167 = vmatprep.subr.mxu0 0.0
    %168 = vmatpush1.msra.mxu0 %v42
    %169 = vmatprep.subr.mxu0 0.0
    %170 = vmatpush1.msra.mxu0 %v41
    %171 = vmatprep.subr.mxu0 0.0
    %172 = vmatpush1.msra.mxu0 %v40
    %173 = vmatprep.subr.mxu0 0.0
    %174 = vmatpush2.msra.mxu0 0.0
    %175 = vmatprep.subr.mxu0 0.0
    %176 = vmatpush2.msra.mxu0 0.0
    %177 = vmatprep.subr.mxu0 0.0
    %178 = vmatpush2.msra.mxu0 0.0
    %179 = vmatprep.subr.mxu0 0.0
    %180 = vmatpush2.msra.mxu0 0.0
    %181 = vmatprep.subr.mxu0 0.0
    %182 = vmatpush2.msra.mxu0 0.0
    %183 = vmatprep.subr.mxu0 0.0
    %184 = vmatpush2.msra.mxu0 0.0
    %185 = vmatprep.subr.mxu0 0.0
    %186 = vmatpush2.msra.mxu0 0.0
    %187 = vmatprep.subr.mxu0 0.0
    %188 = vmatpush2.msra.mxu0 0.0
    %189 = vmatprep.subr.mxu0 0.0
    %190 = vmatpush2.msra.mxu0 0.0
    %191 = vmatprep.subr.mxu0 0.0
    %192 = vmatpush2.msra.mxu0 0.0
    %193 = vmatprep.subr.mxu0 0.0
    %194 = vmatpush2.msra.mxu0 0.0
    %195 = vmatprep.subr.mxu0 0.0
    %196 = vmatpush2.msra.mxu0 0.0
    %197 = vmatprep.subr.mxu0 0.0
    %198 = vmatpush2.msra.mxu0 0.0
    %199 = vmatprep.subr.mxu0 0.0
    %200 = vmatpush2.msra.mxu0 0.0
    %201 = vmatprep.subr.mxu0 0.0
    %202 = vmatpush2.msra.mxu0 0.0
    %203 = vmatprep.subr.mxu0 0.0
    %204 = vmatpush2.msra.mxu0 0.0
    %205 = vmatprep.mubr.f32.mxu0 0.0
    %206 = vmatmul.mubr.f32.gmra.mxu0 %v136
    %v207 = vpop.f32.mrf.mxu0
    %v208 = vadd.f32 %v140, %v207
    %v209 = vpop.f32.mrf.mxu0
    %210 = vdwg.mxu0
    %211 = vst [vmem:[%s2] sm:$0xff] %v208
    // Predicated region
    $region18: #{_lambda_.1} parent=1 // pred_check
      _
    $region19: #{_lambda_.1} parent=1 // pred_check_branch
      %213 = sbr.rel (0) target = $region21
    $region20: #{_lambda_.1} parent=1 // pred_region
      _
    $region21: #{_lambda_.1} parent=1 // pred_fallthru
      _
    // Predicated region
    $region22: #{_lambda_.1} parent=1 // pred_check
      _
    $region23: #{_lambda_.1} parent=1 // pred_check_branch
      %215 = sbr.rel (0) target = $region25
    $region24: #{_lambda_.1} parent=1 // pred_region
      _
    $region25: #{_lambda_.1} parent=1 // pred_fallthru
      _
    %216 = vsyncpa [#allocation3], 1
    %217 = vsyncpa [#allocation5], 1

</llo_original>
